<compile_context>
chip_gen: v7x
topology: tpu7x:2x2x1
jax: 0.10.0
libtpu: 0.0.40
codegen_flags: <defaults>
</compile_context>

<pallas_src>
import functools

import numpy as np

import jax
import jax.numpy as jnp
from jax.experimental import pallas as pl
from jax.experimental.pallas import tpu as pltpu

M1 = 0.9
M2 = 0.1
LAMBDA_ = 0.5

# Max rows per grid step.  (TILE_B, 128-lane-padded) f32, double buffered, plus
# the labels tile, is ~2 MiB for C<=128 -- comfortably inside v7x's 64 MiB
# physical / ~32 MiB default-scoped VMEM, and trivially inside v5e/v6e.
_TILE_B_MAX = 1024


def _margin_loss_fwd_impl(v, labels):
    """Pallas forward pass. v: (B, C) f32 squared lengths, labels: (B,) int."""
    B, C = v.shape
    labels2d = labels.astype(jnp.int32).reshape(B, 1)

    tile_b = B if B <= _TILE_B_MAX else _TILE_B_MAX
    num_tiles = pl.cdiv(B, tile_b)
    inv_b = 1.0 / B  # static Python float -> constant-folded multiply

    def kernel(v_ref, lbl_ref, out_ref):
        step = pl.program_id(0)

        @pl.when(step == 0)
        def _init():
            out_ref[0, 0] = jnp.float32(0.0)

        v_blk = jnp.maximum(v_ref[...], 0.0)          # guard sqrt against tiny negatives
        lbl = lbl_ref[...]                            # (tile_b, 1) i32

        # boolean one-hot via 2-D iota compare (TPU needs >=2D iota)
        class_ids = jax.lax.broadcasted_iota(jnp.int32, v_blk.shape, 1)
        mask = class_ids == lbl                       # (tile_b, C) bool

        v_norm = jnp.sqrt(v_blk)
        pos = jnp.maximum(M1 - v_norm, 0.0)           # relu(m1 - ||v||)
        neg = jnp.maximum(v_norm - M2, 0.0) * LAMBDA_  # lambda * relu(||v|| - m2)
        loss = jnp.where(mask, pos, neg)              # (tile_b, C)

        if B % tile_b != 0:
            # zero out padded rows of the last (partial) tile
            row_ids = jax.lax.broadcasted_iota(jnp.int32, v_blk.shape, 0) + step * tile_b
            loss = jnp.where(row_ids < B, loss, 0.0)

        out_ref[0, 0] += jnp.sum(loss)

        @pl.when(step == num_tiles - 1)
        def _finalize():
            out_ref[0, 0] = out_ref[0, 0] * jnp.float32(inv_b)

    out = pl.pallas_call(
        kernel,
        out_shape=jax.ShapeDtypeStruct((1, 1), jnp.float32),
        grid=(num_tiles,),
        in_specs=[
            pl.BlockSpec((tile_b, C), lambda i: (i, 0)),
            pl.BlockSpec((tile_b, 1), lambda i: (i, 0)),
        ],
        # scalar result: resident SMEM accumulator, no padded VMEM output tile
        out_specs=pl.BlockSpec(memory_space=pltpu.SMEM),
        compiler_params=pltpu.CompilerParams(
            dimension_semantics=("arbitrary",)),
    )(v.astype(jnp.float32), labels2d)
    return out[0, 0]


# --- custom VJP so the Pallas loss is trainable (pallas_call has no autodiff) ---

@jax.custom_vjp
def margin_loss(v, labels):
    """v: (B, C) float32 squared capsule lengths; labels: (B,) int32."""
    return _margin_loss_fwd_impl(v, labels)


def _margin_loss_vjp_fwd(v, labels):
    return _margin_loss_fwd_impl(v, labels), (v, labels)


def _margin_loss_vjp_bwd(residuals, g):
    v, labels = residuals
    B, C = v.shape
    v_safe = jnp.maximum(v.astype(jnp.float32), 1e-12)
    v_norm = jnp.sqrt(v_safe)
    onehot = labels.astype(jnp.int32).reshape(B, 1) == jnp.arange(C, dtype=jnp.int32)[None, :]
    d_pos = -jnp.where(M1 - v_norm > 0, 1.0, 0.0)
    d_neg = LAMBDA_ * jnp.where(v_norm - M2 > 0, 1.0, 0.0)
    d_norm = jnp.where(onehot, d_pos, d_neg)
    dv = (g * (1.0 / B)) * d_norm * (0.5 / v_norm)
    # integer input -> float0 cotangent
    return dv.astype(v.dtype), np.zeros(labels.shape, dtype=jax.dtypes.float0)


margin_loss.defvjp(_margin_loss_vjp_fwd, _margin_loss_vjp_bwd)


def margin_loss_ref(v, labels):
    """Pure-JAX reference mirroring the PyTorch module."""
    n_labels = v.shape[1]
    v_norm = jnp.sqrt(v)
    onehot = jnp.eye(n_labels, dtype=v.dtype)[labels]
    loss = onehot * jax.nn.relu(M1 - v_norm) + LAMBDA_ * (1.0 - onehot) * jax.nn.relu(v_norm - M2)
    return loss.sum(axis=-1).mean()


if __name__ == "__main__":
    key = jax.random.PRNGKey(0)
    kv, kl = jax.random.split(key)

    B, C = 8, 16  # batch, n_labels
    # squared capsule lengths are in (0, 1); keep them strictly positive
    v = jax.random.uniform(kv, (B, C), dtype=jnp.float32, minval=0.01, maxval=0.99)
    labels = jax.random.randint(kl, (B,), 0, C, dtype=jnp.int32)

    # forward
    out = jax.block_until_ready(margin_loss(v, labels))
    ref = margin_loss_ref(v, labels)
    assert jnp.allclose(out, ref, rtol=1e-5, atol=1e-5), (out, ref)

    # backward (custom_vjp) vs. autodiff of the pure-JAX reference
    g_kernel = jax.block_until_ready(jax.grad(margin_loss)(v, labels))
    g_ref = jax.grad(margin_loss_ref)(v, labels)
    assert jnp.allclose(g_kernel, g_ref, rtol=1e-4, atol=1e-6), (g_kernel, g_ref)

    print("KERNEL_OK")
</pallas_src>

<mosaic_0001>
module attributes {stable_mosaic.version = 11 : i64} {
  func.func @kernel(%arg0: i32, %arg1: memref<8x16xf32, #tpu.memory_space<vmem>>, %arg2: memref<8x1xi32, #tpu.memory_space<vmem>>, %arg3: memref<1x1xf32, #tpu.memory_space<smem>>) attributes {dimension_semantics = [#tpu.dimension_semantics<arbitrary>], iteration_bounds = array<i64: 1>, scalar_prefetch = 0 : i64, scratch_operands = 0 : i64, tpu.core_type = #tpu.core_type<tc>, window_params = [{transform_indices = @transform_0, window_bounds = array<i64: 8, 16>}, {transform_indices = @transform_1, window_bounds = array<i64: 8, 1>}, {transform_indices = @transform_2, window_bounds = array<i64: 1, 1>}]} {
    %c0_i32 = arith.constant 0 : i32
    %0 = arith.cmpi eq, %arg0, %c0_i32 : i32
    %1 = arith.extui %0 : i1 to i32
    %c0_i32_0 = arith.constant 0 : i32
    %2 = arith.cmpi ne, %1, %c0_i32_0 : i32
    scf.if %2 {
      %cst_16 = arith.constant 0.000000e+00 : f32
      %c0_17 = arith.constant 0 : index
      %c0_18 = arith.constant 0 : index
      %32 = memref.load %arg3[%c0_17, %c0_18] : memref<1x1xf32, #tpu.memory_space<smem>>
      memref.store %cst_16, %arg3[%c0_17, %c0_18] : memref<1x1xf32, #tpu.memory_space<smem>>
    } else {
    }
    %c0 = arith.constant 0 : index
    %c0_1 = arith.constant 0 : index
    %3 = vector.load %arg1[%c0, %c0_1] : memref<8x16xf32, #tpu.memory_space<vmem>>, vector<8x16xf32>
    %cst = arith.constant 0.000000e+00 : f32
    %4 = vector.broadcast %cst : f32 to vector<8x16xf32>
    %5 = arith.maximumf %3, %4 : vector<8x16xf32>
    %c0_2 = arith.constant 0 : index
    %c0_3 = arith.constant 0 : index
    %6 = vector.load %arg2[%c0_2, %c0_3] : memref<8x1xi32, #tpu.memory_space<vmem>>, vector<8x1xi32>
    %7 = tpu.iota {dimensions = array<i32: 1>} : vector<8x16xi32>
    %8 = vector.broadcast %6 : vector<8x1xi32> to vector<8x16xi32>
    %9 = arith.cmpi eq, %7, %8 : vector<8x16xi32>
    %10 = math.sqrt %5 : vector<8x16xf32>
    %cst_4 = arith.constant 0.899999976 : f32
    %11 = vector.broadcast %cst_4 : f32 to vector<8x16xf32>
    %12 = arith.subf %11, %10 : vector<8x16xf32>
    %cst_5 = arith.constant 0.000000e+00 : f32
    %13 = vector.broadcast %cst_5 : f32 to vector<8x16xf32>
    %14 = arith.maximumf %12, %13 : vector<8x16xf32>
    %cst_6 = arith.constant 1.000000e-01 : f32
    %15 = vector.broadcast %cst_6 : f32 to vector<8x16xf32>
    %16 = arith.subf %10, %15 : vector<8x16xf32>
    %cst_7 = arith.constant 0.000000e+00 : f32
    %17 = vector.broadcast %cst_7 : f32 to vector<8x16xf32>
    %18 = arith.maximumf %16, %17 : vector<8x16xf32>
    %cst_8 = arith.constant 5.000000e-01 : f32
    %19 = vector.broadcast %cst_8 : f32 to vector<8x16xf32>
    %20 = arith.mulf %18, %19 : vector<8x16xf32>
    %21 = arith.select %9, %14, %20 : vector<8x16xi1>, vector<8x16xf32>
    %c0_9 = arith.constant 0 : index
    %c0_10 = arith.constant 0 : index
    %22 = memref.load %arg3[%c0_9, %c0_10] : memref<1x1xf32, #tpu.memory_space<smem>>
    %23 = vector.shape_cast %21 : vector<8x16xf32> to vector<1x8x16xf32>
    %cst_11 = arith.constant dense<0.000000e+00> : vector<1xf32>
    %24 = vector.multi_reduction <add>, %23, %cst_11 [1, 2] : vector<1x8x16xf32> to vector<1xf32>
    %25 = vector.shape_cast %24 : vector<1xf32> to vector<1x1x1xf32>
    %26 = vector.extract %25[0, 0, 0] : f32 from vector<1x1x1xf32>
    %27 = arith.addf %22, %26 : f32
    %c0_12 = arith.constant 0 : index
    %c0_13 = arith.constant 0 : index
    %28 = memref.load %arg3[%c0_12, %c0_13] : memref<1x1xf32, #tpu.memory_space<smem>>
    memref.store %27, %arg3[%c0_12, %c0_13] : memref<1x1xf32, #tpu.memory_space<smem>>
    %c0_i32_14 = arith.constant 0 : i32
    %29 = arith.cmpi eq, %arg0, %c0_i32_14 : i32
    %30 = arith.extui %29 : i1 to i32
    %c0_i32_15 = arith.constant 0 : i32
    %31 = arith.cmpi ne, %30, %c0_i32_15 : i32
    scf.if %31 {
      %c0_16 = arith.constant 0 : index
      %c0_17 = arith.constant 0 : index
      %32 = memref.load %arg3[%c0_16, %c0_17] : memref<1x1xf32, #tpu.memory_space<smem>>
      %cst_18 = arith.constant 1.250000e-01 : f32
      %33 = arith.mulf %32, %cst_18 : f32
      %c0_19 = arith.constant 0 : index
      %c0_20 = arith.constant 0 : index
      %34 = memref.load %arg3[%c0_19, %c0_20] : memref<1x1xf32, #tpu.memory_space<smem>>
      memref.store %33, %arg3[%c0_19, %c0_20] : memref<1x1xf32, #tpu.memory_space<smem>>
    } else {
    }
    return
  }
  func.func @transform_0(%arg0: i32) -> (i32, i32) {
    %c0_i32 = arith.constant 0 : i32
    %c0_i32_0 = arith.constant 0 : i32
    return %arg0, %c0_i32 : i32, i32
  }
  func.func @transform_1(%arg0: i32) -> (i32, i32) {
    %c0_i32 = arith.constant 0 : i32
    %c0_i32_0 = arith.constant 0 : i32
    return %arg0, %c0_i32 : i32, i32
  }
  func.func @transform_2(%arg0: i32) -> (i32, i32) {
    %c0_i32 = arith.constant 0 : i32
    %c0_i32_0 = arith.constant 0 : i32
    %c0_i32_1 = arith.constant 0 : i32
    return %c0_i32, %c0_i32_0 : i32, i32
  }
}

</mosaic_0001>

<llo_original>
// kernel: tpu_custom_call.1
$region0: #{tpu_custom_call.1}
  #allocation0 [shape = 'u32[]', space=smem, size = 0x4, offset = 0x4, fixed_abs, tag = 'smem constant byte address 0x4 - core index']
  #allocation1 [shape = 'u32[144,128]{1,0:T(1,128)}', space=vmem, size = 0x12000, scoped, tag = 'internal scratch']
  %s0 = inlined_call_operand.vmem [shape: f32[8,16], index: 0, kind: input, shape index: {}]
  %s1 = inlined_call_operand.vmem [shape: s32[8,1], index: 1, kind: input, shape index: {}]
  %s2 = inlined_call_operand.hbm [shape: f32[1,1], index: 2, kind: output, shape index: {}]
  %s3 = sld [smem:[#allocation0]]
  $region26: #{tpu_custom_call.1} parent=0
    _
  %s5 = ssub.s32 1, %s3
  %s6 = scalar_select 0, %s5, %s3
  $region1: #{tpu_custom_call.1} parent=0
    #allocation2 [shape = 'u8[512]{0}', space=smem, size = 0x200, scoped, tag = 'output window, operand 0, single buffered']
    #allocation3 [shape = 's32[1]{0}', space=sflag, size = 0x4, scoped, tag = 'scoped memory for tpu_custom_call.1']
    %7 = vsyncpa [#allocation3], 0
    // Predicated region
    $region2: #{tpu_custom_call.1} parent=1 // pred_check
      _
    $region3: #{tpu_custom_call.1} parent=1 // pred_check_branch
      %9 = sbr.rel (0) target = $region5
    $region4: #{tpu_custom_call.1} parent=1 // pred_region
      _
    $region5: #{tpu_custom_call.1} parent=1 // pred_fallthru
      _
    // Predicated region
    $region6: #{tpu_custom_call.1} parent=1 // pred_check
      _
    $region7: #{tpu_custom_call.1} parent=1 // pred_check_branch
      %11 = sbr.rel (0) target = $region9
    $region8: #{tpu_custom_call.1} parent=1 // pred_region
      _
    $region9: #{tpu_custom_call.1} parent=1 // pred_fallthru
      _
    %p12 = scmp.eq.s32.totalorder 0, 0
    // Predicated region
    $region10: #{tpu_custom_call.1} parent=1 // pred_check
      %p13 = pneg %p12
    $region11: #{tpu_custom_call.1} parent=1 // pred_check_branch
      %15 = sbr.rel (%p13) target = $region13
    $region12: #{tpu_custom_call.1} parent=1 // pred_region
      %s16 = scalar_lea.smem [#allocation2], 0
      %17 = sst [smem:[%s16]] 0.0
    $region13: #{tpu_custom_call.1} parent=1 // pred_fallthru
      _
    %v18 = vld [vmem:[%s0] sm:$0xff]
    %v19 = vmax.f32 %v18, 0.0
    %v20 = vld [vmem:[%s1] sm:$0xff]
    %v21 = vlaneseq
    %v22 = vand.u32 %v21, 127
    %23 = vset.pattern.permute.xlu0 0
    %24 = vperm.xlu0 %23, %v20
    %v25 = vpop.permute.xlu0 %24
    %vm26 = vcmp.eq.s32.totalorder %v22, %v25
    %v27 = vrsqrt.pop %v19
    %v28 = vmul.f32 %v19, %v27
    %vm29 = vcmp.eq.f32.partialorder %v19, inf
    %v30 = vsel %vm29, %v19, %v28
    %vm31 = vcmp.eq.f32.partialorder %v19, 0.0
    %v32 = vand.u32 %v19, 2147483648
    %v33 = vsel %vm31, %v32, %v30
    %v34 = vsub.f32 0.9, %v33
    %v35 = vmax.f32 %v34, 0.0
    %v36 = vsub.f32 %v33, 0.1
    %v37 = vmax.f32 %v36, 0.0
    %v38 = vmul.f32 %v37, 0.5
    %v39 = vsel %vm26, %v35, %v38
    %s40 = sld [smem:[#allocation2]]
    %vm41 = vcmask 130048
    %v42 = vsel %vm41, %v39, 0.0
    %43 = vadd.xlane.f32.xlu0 %v42
    %v44 = vpop.xlane.xlu0 %43
    %v45 = vrot.slane %v44, 4
    %v46 = vadd.f32 %v44, %v45
    %v47 = vrot.slane %v46, 2
    %v48 = vadd.f32 %v46, %v47
    %v49 = vrot.slane %v48, 1
    %v50 = vadd.f32 %v48, %v49
    %s51 = vtos %v50
    %s52 = sadd.f32 %s40, %s51
    %s53 = scalar_lea.smem [#allocation2], 0
    %54 = sst [smem:[%s53]] %s52
    // Predicated region
    $region14: #{tpu_custom_call.1} parent=1 // pred_check
      %p55 = pneg %p12
    $region15: #{tpu_custom_call.1} parent=1 // pred_check_branch
      %57 = sbr.rel (%p55) target = $region17
    $region16: #{tpu_custom_call.1} parent=1 // pred_region
      %s58 = sld [smem:[#allocation2]]
      %s59 = smul.f32 %s58, 0.125
      %60 = sst [smem:[%s53]] %s59
    $region17: #{tpu_custom_call.1} parent=1 // pred_fallthru
      _
    // Predicated region
    $region18: #{tpu_custom_call.1} parent=1 // pred_check
      _
    $region19: #{tpu_custom_call.1} parent=1 // pred_check_branch
      %62 = sbr.rel (0) target = $region21
    $region20: #{tpu_custom_call.1} parent=1 // pred_region
      %s64 = ssub.s32 16, 16
      %65 = vsyncadd [#allocation3], %s64
      %68 = dma.smem_to_hbm [#allocation2], 16, %s2, [#allocation3]
    $region21: #{tpu_custom_call.1} parent=1 // pred_fallthru
      _
    // Predicated region
    $region22: #{tpu_custom_call.1} parent=1 // pred_check
      _
    $region23: #{tpu_custom_call.1} parent=1 // pred_check_branch
      %70 = sbr.rel (0) target = $region25
    $region24: #{tpu_custom_call.1} parent=1 // pred_region
      %71 = dma.done [#allocation3], 16
    $region25: #{tpu_custom_call.1} parent=1 // pred_fallthru
      _
    %72 = sfence
    %73 = vsyncpa [#allocation3], 1

</llo_original>
